<compile_context>
chip_gen: v7x
topology: tpu7x:2x2x1
jax: 0.10.0
libtpu: 0.0.40
codegen_flags: <defaults>
</compile_context>

<pallas_src>
import functools

import jax
import jax.numpy as jnp
from jax.experimental import pallas as pl
from jax.experimental.pallas import tpu as pltpu


def _gaussian_noise_kernel(noise_ref, x_ref, o_ref):
    # noise_ref : (N, G) float32, SMEM — one scalar per (sample, group)
    # x_ref     : (1, 1, TR, L) tile of one (n, g) slab, VMEM
    # o_ref     : (1, 1, TR, L), aliased with x's HBM buffer
    n = pl.program_id(0)
    g = pl.program_id(1)
    noise = noise_ref[n, g].astype(o_ref.dtype)   # scalar -> free VPU broadcast
    o_ref[...] = x_ref[...] + noise


def _choose_tiles(K, itemsize, target_block_bytes=2 << 20):
    """Pick (L, R, TR) for viewing a K-element slab as (R, L) and tiling R.

    L: lane dim, 128 if it divides K else full K (legal full-extent block).
    R: K // L.
    TR: largest 8-multiple dividing R with TR*L*itemsize <= target; if R is not
        an 8-multiple, fall back to TR = R (full-extent block, still legal).
    """
    L = 128 if K % 128 == 0 else K
    R = K // L
    if R % 8 == 0:
        max_rows = max(8, target_block_bytes // (L * itemsize))
        TR = 8
        t = 8
        while t <= min(R, max_rows):
            if R % t == 0:
                TR = t
            t += 8
    else:
        TR = R
    return L, R, TR


def gaussian_noise(x, *, group_num, mean, stddev, training, key):
    """Pallas implementation of GaussianNoise.forward.

    x: (N, C, H, W) float array. Returns array of same shape/dtype.
    """
    N, C, H, W = x.shape
    total = C * H * W
    assert total % group_num == 0, "C*H*W must be divisible by group_num"
    G = group_num
    K = total // G

    if not training:
        # Eval mode is an identity — skip the kernel entirely (saves 2*x.nbytes
        # of HBM traffic for inference graphs).
        return x

    itemsize = x.dtype.itemsize
    L, R, TR = _choose_tiles(K, itemsize)
    x_t = x.reshape(N, G, R, L)

    # Per-(n, g) noise scalars. Sample in f32 (cast to x.dtype inside the kernel).
    noise = mean + stddev * jax.random.normal(key, (N, G), dtype=jnp.float32)

    grid = (N, G, R // TR)

    out = pl.pallas_call(
        _gaussian_noise_kernel,
        out_shape=jax.ShapeDtypeStruct((N, G, R, L), x.dtype),
        grid_spec=pltpu.PrefetchScalarGridSpec(
            num_scalar_prefetch=0,
            grid=grid,
            in_specs=[
                # tiny (N, G) noise table: whole thing in SMEM, scalar reads
                pl.BlockSpec(memory_space=pltpu.MemorySpace.SMEM),
                # lane/sublane-dense streaming tile of x
                pl.BlockSpec((1, 1, TR, L), lambda n, g, r: (n, g, r, 0)),
            ],
            out_specs=pl.BlockSpec((1, 1, TR, L), lambda n, g, r: (n, g, r, 0)),
        ),
        compiler_params=pltpu.CompilerParams(
            dimension_semantics=("parallel", "parallel", "parallel"),
        ),
        # Output aliases x (input index 1) — in-place add, no extra HBM buffer.
        input_output_aliases={1: 0},
        cost_estimate=pl.CostEstimate(
            flops=x.size,
            transcendentals=0,
            bytes_accessed=2 * x.size * itemsize,
        ),
    )(noise, x_t)

    return out.reshape(N, C, H, W)


def _reference(x, noise_ng, group_num):
    N, C, H, W = x.shape
    return (
        x.reshape(N, group_num, -1) + noise_ng[:, :, None].astype(x.dtype)
    ).reshape(N, C, H, W)


if __name__ == "__main__":
    root = jax.random.PRNGKey(0)
    kx, knoise, kx2, knoise2 = jax.random.split(root, 4)

    # --- Case 1: small shapes consistent with the module (R < 8 fallback path) ---
    N, C, H, W = 2, 4, 16, 16
    group_num = 2
    mean, stddev = 0.0, 0.1
    x = jax.random.normal(kx, (N, C, H, W), dtype=jnp.float32)

    fn = jax.jit(
        functools.partial(
            gaussian_noise,
            group_num=group_num,
            mean=mean,
            stddev=stddev,
            training=True,
        )
    )
    y = fn(x, key=knoise)
    jax.block_until_ready(y)

    noise_vals = mean + stddev * jax.random.normal(knoise, (N, group_num), dtype=jnp.float32)
    y_ref = _reference(x, noise_vals, group_num)
    assert y.shape == x.shape and y.dtype == x.dtype
    assert jnp.allclose(y, y_ref, atol=1e-6, rtol=1e-6)

    # Eval mode: identity (no kernel launched).
    y_eval = gaussian_noise(
        x, group_num=group_num, mean=mean, stddev=stddev, training=False, key=knoise
    )
    jax.block_until_ready(y_eval)
    assert jnp.allclose(y_eval, x)

    # --- Case 2: shape where the 8-multiple sublane-tiled path is exercised ---
    N2, C2, H2, W2 = 2, 8, 32, 32   # K = 4096 -> (R, L) = (32, 128), TR = 32
    g2 = 2
    x2 = jax.random.normal(kx2, (N2, C2, H2, W2), dtype=jnp.float32)
    fn2 = jax.jit(
        functools.partial(
            gaussian_noise, group_num=g2, mean=mean, stddev=stddev, training=True
        )
    )
    y2 = fn2(x2, key=knoise2)
    jax.block_until_ready(y2)
    noise_vals2 = mean + stddev * jax.random.normal(knoise2, (N2, g2), dtype=jnp.float32)
    y2_ref = _reference(x2, noise_vals2, g2)
    assert jnp.allclose(y2, y2_ref, atol=1e-6, rtol=1e-6)

    print("KERNEL_OK")
</pallas_src>

<mosaic_0001>
module attributes {stable_mosaic.version = 11 : i64} {
  func.func @_gaussian_noise_kernel(%arg0: i32, %arg1: i32, %arg2: i32, %arg3: memref<2x2xf32, #tpu.memory_space<smem>>, %arg4: memref<1x1x4x128xf32, #tpu.memory_space<vmem>>, %arg5: memref<1x1x4x128xf32, #tpu.memory_space<vmem>>) attributes {dimension_semantics = [#tpu.dimension_semantics<parallel>, #tpu.dimension_semantics<parallel>, #tpu.dimension_semantics<parallel>], iteration_bounds = array<i64: 2, 2, 1>, scalar_prefetch = 0 : i64, scratch_operands = 0 : i64, tpu.core_type = #tpu.core_type<tc>, window_params = [{transform_indices = @transform_0, window_bounds = array<i64: 2, 2>}, {transform_indices = @transform_1, window_bounds = array<i64: 1, 1, 4, 128>}, {transform_indices = @transform_2, window_bounds = array<i64: 1, 1, 4, 128>}]} {
    %0 = arith.index_cast %arg0 : i32 to index
    %1 = arith.index_cast %arg1 : i32 to index
    %2 = memref.load %arg3[%0, %1] : memref<2x2xf32, #tpu.memory_space<smem>>
    %c0 = arith.constant 0 : index
    %c0_0 = arith.constant 0 : index
    %c0_1 = arith.constant 0 : index
    %c0_2 = arith.constant 0 : index
    %3 = vector.load %arg4[%c0, %c0_0, %c0_1, %c0_2] : memref<1x1x4x128xf32, #tpu.memory_space<vmem>>, vector<1x1x4x128xf32>
    %4 = vector.broadcast %2 : f32 to vector<1x1x4x128xf32>
    %5 = arith.addf %3, %4 : vector<1x1x4x128xf32>
    %c0_3 = arith.constant 0 : index
    %c0_4 = arith.constant 0 : index
    %c0_5 = arith.constant 0 : index
    %c0_6 = arith.constant 0 : index
    %6 = vector.load %arg5[%c0_3, %c0_4, %c0_5, %c0_6] : memref<1x1x4x128xf32, #tpu.memory_space<vmem>>, vector<1x1x4x128xf32>
    tpu.vector_store %arg5[%c0_3, %c0_4, %c0_5, %c0_6], %5 {strides = array<i32>} : memref<1x1x4x128xf32, #tpu.memory_space<vmem>>, vector<1x1x4x128xf32>,
    return
  }
  func.func @transform_0(%arg0: i32, %arg1: i32, %arg2: i32) -> (i32, i32) {
    %c0_i32 = arith.constant 0 : i32
    %c0_i32_0 = arith.constant 0 : i32
    %c0_i32_1 = arith.constant 0 : i32
    return %c0_i32, %c0_i32_0 : i32, i32
  }
  func.func @transform_1(%arg0: i32, %arg1: i32, %arg2: i32) -> (i32, i32, i32, i32) {
    %c0_i32 = arith.constant 0 : i32
    %c0_i32_0 = arith.constant 0 : i32
    return %arg0, %arg1, %arg2, %c0_i32 : i32, i32, i32, i32
  }
  func.func @transform_2(%arg0: i32, %arg1: i32, %arg2: i32) -> (i32, i32, i32, i32) {
    %c0_i32 = arith.constant 0 : i32
    %c0_i32_0 = arith.constant 0 : i32
    return %arg0, %arg1, %arg2, %c0_i32 : i32, i32, i32, i32
  }
}

</mosaic_0001>

<llo_original>
// kernel: gaussian_noise.1
$region0: #{gaussian_noise.1}
  #allocation0 [shape = 'u32[]', space=smem, size = 0x4, offset = 0x4, fixed_abs, tag = 'smem constant byte address 0x4 - core index']
  #allocation1 [shape = 'u32[144,128]{1,0:T(1,128)}', space=vmem, size = 0x12000, scoped, tag = 'internal scratch']
  %s0 = inlined_call_operand.vmem [shape: f32[2,2], index: 0, kind: input, shape index: {}]
  %s1 = inlined_call_operand.vmem [shape: f32[2,2,4,128], index: 1, kind: input, shape index: {}, may-alias: {1,2}]
  %s2 = inlined_call_operand.vmem [shape: f32[2,2,4,128], index: 2, kind: output, shape index: {}, may-alias: {1,2}]
  %s3 = sld [smem:[#allocation0]]
  $region45: #{gaussian_noise.1} parent=0
    _
  %s5 = ssub.s32 1, %s3
  %s6 = scalar_select 0, %s5, %s3
  $region1: #{gaussian_noise.1} parent=0
    #allocation2 [shape = 'u8[1024]{0}', space=smem, size = 0x400, scoped, tag = 'input window, operand 0, single buffered']
    #allocation3 [shape = 's32[2]{0}', space=sflag, size = 0x8, scoped, tag = 'scoped memory for gaussian_noise.1']
    %7 = vsyncpa [#allocation3], 0
    loop: start=0, step=1, limit=6
    $region2: #{gaussian_noise.1} parent=1 // loop_pre_header
      _
    $region3: #{gaussian_noise.1} parent=1 // loop_header
      %s9 = sphi 0, %s13
      %p10 = scmp.ge.s32.totalorder %s9, 6
      %s16 = sphi 0, %s35
      %s17 = sphi 0, %s31
      %s18 = sphi 0, %s27
      %s19 = sphi 0, %s16
      %s20 = sphi 0, %s17
      %s21 = sphi 0, %s18
      %s22 = sphi 0, %s19
      %s23 = sphi 0, %s20
      %s24 = sphi 0, %s21
      %s36 = sphi 0, %s36
      %s38 = sphi 0, %s36
      %s39 = sphi 0, %s38
      %s53 = sphi 0, %s39
      %s63 = sphi 0, %s65
      %s66 = sphi 0, %s63
      %s67 = sphi 0, %s66
      %s83 = sphi 0, %s67
      %s93 = sphi 0, %s95
      %s96 = sphi 0, %s93
      %s97 = sphi 0, %s96
      %s113 = sphi 0, %s97
    $region4: #{gaussian_noise.1} parent=1 // loop_header_branch
      %12 = sbr.rel (%p10) target = $region8
    $region5: #{gaussian_noise.1} parent=1 // loop_body
      %s14 = ssub.s32 %s9, 1
      %s15 = ssub.s32 %s9, 2
      %s25 = sadd.s32 1, %s18
      %p26 = scmp.ge.s32.totalorder %s25, 1
      %s27 = scalar_select %p26, 0, %s25
      %s28 = sadd.s32 1, %s17
      %s29 = scalar_select %p26, %s28, %s17
      %p30 = scmp.ge.s32.totalorder %s29, 2
      %s31 = scalar_select %p30, 0, %s29
      %s32 = sadd.s32 1, %s16
      %s33 = scalar_select %p30, %s32, %s16
      %p34 = scmp.ge.s32.totalorder %s33, 2
      %s35 = scalar_select %p34, 0, %s33
      %s37 = sadd.s32 %s36, 1
      %p40 = scmp.eq.s32.totalorder %s9, 3
      %p41 = scmp.ne.s32.totalorder %s36, %s38
      %p42 = scmp.eq.s32.totalorder %s9, 0
      %p43 = por %p41, %p42
      %p44 = scmp.ne.s32.totalorder %s36, %s38
      %p45 = scmp.eq.s32.totalorder %s14, 3
      %p46 = por %p44, %p45
      %p47 = scmp.ne.s32.totalorder %s38, %s39
      %p48 = scmp.eq.s32.totalorder %s14, 0
      %p49 = por %p47, %p48
      %p50 = scmp.ne.s32.totalorder %s38, %s39
      %p51 = scmp.eq.s32.totalorder %s15, 3
      %p52 = por %p50, %p51
      %p54 = scmp.ne.s32.totalorder %s39, %s53
      %p55 = scmp.eq.s32.totalorder %s15, 0
      %p56 = por %p54, %p55
      %s57 = ssub.s32 %s16, %s35
      %s58 = ssub.s32 %s17, %s31
      %s59 = sor.u32 %s57, %s58
      %s60 = ssub.s32 %s18, %s27
      %s61 = sor.u32 %s59, %s60
      %p62 = scmp.eq.s32.totalorder %s61, 0
      %s64 = sadd.s32 %s63, 1
      %s65 = scalar_select %p62, %s63, %s64
      %p68 = pneg %p62
      %p69 = scmp.eq.s32.totalorder %s9, 3
      %p70 = por %p68, %p69
      %p71 = scmp.ne.s32.totalorder %s63, %s66
      %p72 = scmp.eq.s32.totalorder %s9, 0
      %p73 = por %p71, %p72
      %p74 = scmp.ne.s32.totalorder %s63, %s66
      %p75 = scmp.eq.s32.totalorder %s14, 3
      %p76 = por %p74, %p75
      %p77 = scmp.ne.s32.totalorder %s66, %s67
      %p78 = scmp.eq.s32.totalorder %s14, 0
      %p79 = por %p77, %p78
      %p80 = scmp.ne.s32.totalorder %s66, %s67
      %p81 = scmp.eq.s32.totalorder %s15, 3
      %p82 = por %p80, %p81
      %p84 = scmp.ne.s32.totalorder %s67, %s83
      %p85 = scmp.eq.s32.totalorder %s15, 0
      %p86 = por %p84, %p85
      %s87 = ssub.s32 %s16, %s35
      %s88 = ssub.s32 %s17, %s31
      %s89 = sor.u32 %s87, %s88
      %s90 = ssub.s32 %s18, %s27
      %s91 = sor.u32 %s89, %s90
      %p92 = scmp.eq.s32.totalorder %s91, 0
      %s94 = sadd.s32 %s93, 1
      %s95 = scalar_select %p92, %s93, %s94
      %p98 = pneg %p92
      %p99 = scmp.eq.s32.totalorder %s9, 3
      %p100 = por %p98, %p99
      %p101 = scmp.ne.s32.totalorder %s93, %s96
      %p102 = scmp.eq.s32.totalorder %s9, 0
      %p103 = por %p101, %p102
      %p104 = scmp.ne.s32.totalorder %s93, %s96
      %p105 = scmp.eq.s32.totalorder %s14, 3
      %p106 = por %p104, %p105
      %p107 = scmp.ne.s32.totalorder %s96, %s97
      %p108 = scmp.eq.s32.totalorder %s14, 0
      %p109 = por %p107, %p108
      %p110 = scmp.ne.s32.totalorder %s96, %s97
      %p111 = scmp.eq.s32.totalorder %s15, 3
      %p112 = por %p110, %p111
      %p114 = scmp.ne.s32.totalorder %s97, %s113
      %p115 = scmp.eq.s32.totalorder %s15, 0
      %p116 = por %p114, %p115
      %p117 = scmp.le.s32.totalorder 1, %s9
      %p118 = scmp.lt.s32.totalorder %s9, 5
      %p119 = pnand %p117, %p118
      %p120 = pneg %p119
      // Predicated region
      $region9: #{gaussian_noise.1} parent=5 // pred_check
        _
      $region10: #{gaussian_noise.1} parent=5 // pred_check_branch
        %122 = sbr.rel (%p119) target = $region12
      $region11: #{gaussian_noise.1} parent=5 // pred_region
        %s123 = ssub.s32 %s9, 1
        // Predicated region
        $region13: #{gaussian_noise.1} parent=11 // pred_check
          %p124 = pneg %p49
        $region14: #{gaussian_noise.1} parent=11 // pred_check_branch
          %126 = sbr.rel (%p124) target = $region16
        $region15: #{gaussian_noise.1} parent=11 // pred_region
          %s128 = ssub.s32 32, 32
          %129 = vsyncadd [#allocation3], %s128
          %s131 = sshll.u32 %s0, 4
          %s132 = int_to_ptr.vmem [resolvable:$true] %s131
          %134 = dma.vmem_to_smem %s132, 32, [#allocation2], [#allocation3]
        $region16: #{gaussian_noise.1} parent=11 // pred_fallthru
          _
      $region12: #{gaussian_noise.1} parent=5 // pred_fallthru
        _
      %p135 = scmp.lt.s32.totalorder %s9, 4
      // Predicated region
      $region17: #{gaussian_noise.1} parent=5 // pred_check
        %p136 = pneg %p135
      $region18: #{gaussian_noise.1} parent=5 // pred_check_branch
        %138 = sbr.rel (%p136) target = $region20
      $region19: #{gaussian_noise.1} parent=5 // pred_region
        // Predicated region
        $region21: #{gaussian_noise.1} parent=19 // pred_check
          %p139 = pneg %p73
        $region22: #{gaussian_noise.1} parent=19 // pred_check_branch
          %141 = sbr.rel (%p139) target = $region24
        $region23: #{gaussian_noise.1} parent=19 // pred_region
          %p142 = scmp.lt.s32.totalorder %s16, 1
          %s143 = scalar_select %p142, %s16, 1
          %p144 = scmp.lt.s32.totalorder %s17, 1
          %s145 = scalar_select %p144, %s17, 1
          %p146 = scmp.lt.s32.totalorder %s18, 0
          %s147 = scalar_select %p146, %s18, 0
          %s148 = sadd.s32 %s147, %s145
          %s149 = smul.addr %s143, 2
          %s150 = sadd.s32 %s148, %s149
          %s151 = smul.addr %s150, 4
          %s152 = scalar_lea.vmem %s1, %s151
        $region24: #{gaussian_noise.1} parent=19 // pred_fallthru
          _
      $region20: #{gaussian_noise.1} parent=5 // pred_fallthru
        _
      %p153 = scmp.le.s32.totalorder 1, %s9
      %p154 = scmp.lt.s32.totalorder %s9, 5
      %p155 = pnand %p153, %p154
      %p156 = pneg %p155
      // Predicated region
      $region25: #{gaussian_noise.1} parent=5 // pred_check
        _
      $region26: #{gaussian_noise.1} parent=5 // pred_check_branch
        %158 = sbr.rel (%p155) target = $region28
      $region27: #{gaussian_noise.1} parent=5 // pred_region
        %s159 = ssub.s32 %s9, 1
        // Predicated region
        $region29: #{gaussian_noise.1} parent=27 // pred_check
          %p160 = pneg %p49
        $region30: #{gaussian_noise.1} parent=27 // pred_check_branch
          %162 = sbr.rel (%p160) target = $region32
        $region31: #{gaussian_noise.1} parent=27 // pred_region
          %163 = dma.done [#allocation3], 32
        $region32: #{gaussian_noise.1} parent=27 // pred_fallthru
          _
        %164 = sfence
        %p165 = pneg %p49
        %p166 = pneg %p46
        %p167 = scmp.lt.s32.totalorder %s19, 1
        %s168 = scalar_select %p167, %s19, 1
        %p169 = scmp.lt.s32.totalorder %s20, 1
        %s170 = scalar_select %p169, %s20, 1
        %p171 = scmp.lt.s32.totalorder %s21, 0
        %s172 = scalar_select %p171, %s21, 0
        %s173 = sadd.s32 %s172, %s170
        %s174 = smul.addr %s168, 2
        %s175 = sadd.s32 %s173, %s174
        %s176 = smul.addr %s175, 4
        %s177 = scalar_lea.vmem %s1, %s176
        %p178 = pneg %p79
        %p179 = pneg %p76
        %p180 = pneg %p109
        %p181 = pneg %p106
        %p182 = scmp.lt.s32.totalorder %s19, 1
        %s183 = scalar_select %p182, %s19, 1
        %p184 = scmp.lt.s32.totalorder %s20, 1
        %s185 = scalar_select %p184, %s20, 1
        %p186 = scmp.lt.s32.totalorder %s21, 0
        %s187 = scalar_select %p186, %s21, 0
        %s188 = sadd.s32 %s187, %s185
        %s189 = smul.addr %s183, 2
        %s190 = sadd.s32 %s188, %s189
        %s191 = smul.addr %s190, 4
        %s192 = scalar_lea.vmem %s2, %s191
        %p193 = scmp.lt.s32.totalorder %s19, 1
        %s194 = scalar_select %p193, %s19, 1
        %p195 = scmp.lt.s32.totalorder %s20, 1
        %s196 = scalar_select %p195, %s20, 1
        %p197 = scmp.lt.s32.totalorder %s21, 0
        %s198 = scalar_select %p197, %s21, 0
        %s199 = sadd.s32 %s198, %s196
        %s200 = smul.addr %s194, 2
        %s201 = sadd.s32 %s199, %s200
        %s202 = smul.addr %s201, 4
        %s203 = scalar_lea.vmem %s1, %s202
        %p204 = scmp.lt.s32.totalorder %s19, 1
        %s205 = scalar_select %p204, %s19, 1
        %p206 = scmp.lt.s32.totalorder %s20, 1
        %s207 = scalar_select %p206, %s20, 1
        %p208 = scmp.lt.s32.totalorder %s21, 0
        %s209 = scalar_select %p208, %s21, 0
        %s210 = sadd.s32 %s209, %s207
        %s211 = smul.addr %s205, 2
        %s212 = sadd.s32 %s210, %s211
        %s213 = smul.addr %s212, 4
        %s214 = scalar_lea.vmem %s2, %s213
        %s215 = sshra.s32 %s20, 7
        %s216 = sand.u32 %s20, 127
        %s217 = sadd.s32 %s215, %s19
        %s218 = smul.u32 %s217, 128
        %s219 = sshra.s32 %s20, 7
        %s220 = sand.u32 %s20, 127
        %s221 = sadd.s32 %s218, %s220
        %s222 = sld [smem:[#allocation2 + %s221]]
        %v223 = vld [vmem:[%s203] sm:$0xf]
        %v224 = vstv %s222
        %v225 = vadd.f32 %v223, %v224
        %226 = vst [vmem:[%s214] sm:$0xf] %v225
        %p227 = scmp.lt.s32.totalorder %s19, 1
        %s228 = scalar_select %p227, %s19, 1
        %p229 = scmp.lt.s32.totalorder %s20, 1
        %s230 = scalar_select %p229, %s20, 1
        %p231 = scmp.lt.s32.totalorder %s21, 0
        %s232 = scalar_select %p231, %s21, 0
        %s233 = sadd.s32 %s232, %s230
        %s234 = smul.addr %s228, 2
        %s235 = sadd.s32 %s233, %s234
        %s236 = smul.addr %s235, 4
        %s237 = scalar_lea.vmem %s2, %s236
        // Predicated region
        $region33: #{gaussian_noise.1} parent=27 // pred_check
          %p238 = pneg %p106
        $region34: #{gaussian_noise.1} parent=27 // pred_check_branch
          %240 = sbr.rel (%p238) target = $region36
        $region35: #{gaussian_noise.1} parent=27 // pred_region
          _
        $region36: #{gaussian_noise.1} parent=27 // pred_fallthru
          _
      $region28: #{gaussian_noise.1} parent=5 // pred_fallthru
        _
      %p241 = scmp.le.s32.totalorder 2, %s9
      // Predicated region
      $region37: #{gaussian_noise.1} parent=5 // pred_check
        %p242 = pneg %p241
      $region38: #{gaussian_noise.1} parent=5 // pred_check_branch
        %244 = sbr.rel (%p242) target = $region40
      $region39: #{gaussian_noise.1} parent=5 // pred_region
        %s245 = ssub.s32 %s9, 2
        // Predicated region
        $region41: #{gaussian_noise.1} parent=39 // pred_check
          %p246 = pneg %p112
        $region42: #{gaussian_noise.1} parent=39 // pred_check_branch
          %248 = sbr.rel (%p246) target = $region44
        $region43: #{gaussian_noise.1} parent=39 // pred_region
          %p249 = scmp.lt.s32.totalorder %s22, 1
          %s250 = scalar_select %p249, %s22, 1
          %p251 = scmp.lt.s32.totalorder %s23, 1
          %s252 = scalar_select %p251, %s23, 1
          %p253 = scmp.lt.s32.totalorder %s24, 0
          %s254 = scalar_select %p253, %s24, 0
          %s255 = sadd.s32 %s254, %s252
          %s256 = smul.addr %s250, 2
          %s257 = sadd.s32 %s255, %s256
          %s258 = smul.addr %s257, 4
          %s259 = scalar_lea.vmem %s2, %s258
        $region44: #{gaussian_noise.1} parent=39 // pred_fallthru
          _
      $region40: #{gaussian_noise.1} parent=5 // pred_fallthru
        _
    $region6: #{gaussian_noise.1} parent=1 // loop_footer
      %s13 = sadd.s32 1, %s9
    $region7: #{gaussian_noise.1} parent=1 // loop_footer_branch
      %8 = sbr.rel target = $region3
    $region8: #{gaussian_noise.1} parent=1 // loop_exit
      _
    %260 = vsyncpa [#allocation3], 1
    %s261 = scalar_lea.sflag [#allocation3], 1
    %262 = vsyncpa %s261, 1

</llo_original>
